<compile_context>
chip_gen: v7x
topology: tpu7x:2x2x1
jax: 0.10.0
libtpu: 0.0.40
codegen_flags: <defaults>
</compile_context>

<pallas_src>
import jax
import jax.numpy as jnp
import numpy as np
from jax.experimental import pallas as pl
from jax.experimental.pallas import tpu as pltpu

EPS = 1e-12  # matches torch.nn.functional.normalize default eps


def _round_up(v: int, m: int) -> int:
    return ((v + m - 1) // m) * m


def arc_margin_kernel(x_ref, w_ref, inv_xn_ref, inv_wn_ref, o_ref):
    # Raw matmul, contracting the last dims of both operands: no W transpose is
    # materialized, and the MXU accumulates in f32.
    acc = jax.lax.dot_general(
        x_ref[...], w_ref[...],
        dimension_numbers=(((1,), (1,)), ((), ())),
        preferred_element_type=jnp.float32,
    )                                                          # (tb, tc) f32

    # Normalize via output scaling: (tb,1) * (tb,tc) * (1,tc), all f32 on the VPU.
    o_ref[...] = (acc * inv_xn_ref[...] * inv_wn_ref[...]).astype(o_ref.dtype)


def arc_margin_product(
    x: jax.Array,
    weight: jax.Array,
    *,
    tb_max: int = 256,
    tc_max: int = 2048,           # sized for v7x's 64 MiB VMEM; fine on v5e/v6e too
    mxu_dtype=jnp.bfloat16,       # bf16 MXU feed on v5e/v6e/v7x; use jnp.float32 for parity
) -> jax.Array:
    """x: (B, in_features), weight: (out_features, in_features) -> (B, out_features) f32."""
    B, F = x.shape
    C, F2 = weight.shape
    assert F == F2, "in_features mismatch"

    # Lane-dense padding (zeros preserve norms and dot products).
    F_pad = _round_up(F, 128)
    tb = min(_round_up(B, 8), tb_max)
    B_pad = _round_up(B, tb)
    tc = min(_round_up(C, 128), tc_max)
    C_pad = _round_up(C, tc)

    x32 = x.astype(jnp.float32)
    w32 = weight.astype(jnp.float32)
    x_p = jnp.zeros((B_pad, F_pad), jnp.float32).at[:B, :F].set(x32)
    w_p = jnp.zeros((C_pad, F_pad), jnp.float32).at[:C, :F].set(w32)

    # Hoisted inverse row norms, computed exactly once in f32 before any bf16 cast.
    #   inv = 1 / max(||row||, eps)  ==  rsqrt(max(||row||^2, eps^2))
    inv_xn = jax.lax.rsqrt(
        jnp.maximum(jnp.sum(x_p * x_p, axis=-1, keepdims=True), EPS * EPS)
    )                                                   # (B_pad, 1) f32
    inv_wn = jax.lax.rsqrt(
        jnp.maximum(jnp.sum(w_p * w_p, axis=-1), EPS * EPS)
    ).reshape(1, C_pad)                                 # (1, C_pad) f32

    # Cast MXU operands once in the wrapper: halves x and W HBM->VMEM traffic
    # when feeding bf16 (norm factors above are already safely in f32).
    x_in = x_p.astype(mxu_dtype)
    w_in = w_p.astype(mxu_dtype)

    grid = (B_pad // tb, C_pad // tc)

    # VMEM working-set estimate (double-buffered); only raise the scoped limit if needed.
    itm = np.dtype(mxu_dtype).itemsize
    est_vmem = 2 * (tb * F_pad * itm + tc * F_pad * itm + tb * tc * 4 + tb * 4 + tc * 4)
    cp_kwargs = dict(dimension_semantics=("parallel", "parallel"))
    if est_vmem > (12 << 20):
        cp_kwargs["vmem_limit_bytes"] = int(min(2 * est_vmem, 96 << 20))
    compiler_params = pltpu.CompilerParams(**cp_kwargs)

    out_pad = pl.pallas_call(
        arc_margin_kernel,
        out_shape=jax.ShapeDtypeStruct((B_pad, C_pad), jnp.float32),
        grid_spec=pltpu.PrefetchScalarGridSpec(
            num_scalar_prefetch=0,
            grid=grid,
            in_specs=[
                pl.BlockSpec((tb, F_pad), lambda bi, ci: (bi, 0)),   # x tile (resident per bi)
                pl.BlockSpec((tc, F_pad), lambda bi, ci: (ci, 0)),   # W tile (streamed)
                pl.BlockSpec((tb, 1), lambda bi, ci: (bi, 0)),       # hoisted 1/||x||
                pl.BlockSpec((1, tc), lambda bi, ci: (0, ci)),       # hoisted 1/||w||
            ],
            out_specs=pl.BlockSpec((tb, tc), lambda bi, ci: (bi, ci)),
        ),
        compiler_params=compiler_params,
    )(x_in, w_in, inv_xn, inv_wn)

    return out_pad[:B, :C]


def xavier_uniform(key, out_features: int, in_features: int) -> jax.Array:
    """Deterministic stand-in for nn.init.xavier_uniform_ on (out, in) weight."""
    bound = jnp.sqrt(6.0 / (in_features + out_features))
    return jax.random.uniform(
        key, (out_features, in_features), dtype=jnp.float32,
        minval=-bound, maxval=bound,
    )


def _reference(x, weight):
    xn = x / jnp.maximum(jnp.linalg.norm(x, axis=-1, keepdims=True), EPS)
    wn = weight / jnp.maximum(jnp.linalg.norm(weight, axis=-1, keepdims=True), EPS)
    return xn @ wn.T


if __name__ == "__main__":
    key = jax.random.PRNGKey(0)
    k_x, k_w, k_x2, k_w2 = jax.random.split(key, 4)

    # Small shapes consistent with the module: (batch, in_features) x (out, in).
    batch, in_features, out_features = 8, 32, 16
    x = jax.random.normal(k_x, (batch, in_features), dtype=jnp.float32)
    weight = xavier_uniform(k_w, out_features, in_features)
    ref = _reference(x, weight)

    # Default path: bf16 MXU operands, f32 accumulate + f32 norm scaling.
    out_bf16 = jax.block_until_ready(arc_margin_product(x, weight))
    assert out_bf16.shape == (batch, out_features)
    assert jnp.allclose(out_bf16, ref, atol=2e-2, rtol=2e-2)

    # f32-operand path: exact parity with the f32 reference.
    out_f32 = jax.block_until_ready(
        arc_margin_product(x, weight, mxu_dtype=jnp.float32)
    )
    assert jnp.allclose(out_f32, ref, atol=1e-5, rtol=1e-5)

    # Exercise the multi-tile path (grid = (2, 3)) with small forced tile sizes.
    b2, f2, c2 = 32, 96, 384
    x2 = jax.random.normal(k_x2, (b2, f2), dtype=jnp.float32)
    w2 = xavier_uniform(k_w2, c2, f2)
    ref2 = _reference(x2, w2)
    out2 = jax.block_until_ready(
        arc_margin_product(x2, w2, tb_max=16, tc_max=128, mxu_dtype=jnp.float32)
    )
    assert out2.shape == (b2, c2)
    assert jnp.allclose(out2, ref2, atol=1e-5, rtol=1e-5)

    print("KERNEL_OK")
</pallas_src>

<mosaic_0001>
module attributes {stable_mosaic.version = 11 : i64} {
  func.func @arc_margin_kernel(%arg0: i32, %arg1: i32, %arg2: memref<8x128xbf16, #tpu.memory_space<vmem>>, %arg3: memref<128x128xbf16, #tpu.memory_space<vmem>>, %arg4: memref<8x1xf32, #tpu.memory_space<vmem>>, %arg5: memref<1x128xf32, #tpu.memory_space<vmem>>, %arg6: memref<8x128xf32, #tpu.memory_space<vmem>>) attributes {dimension_semantics = [#tpu.dimension_semantics<parallel>, #tpu.dimension_semantics<parallel>], iteration_bounds = array<i64: 1, 1>, scalar_prefetch = 0 : i64, scratch_operands = 0 : i64, tpu.core_type = #tpu.core_type<tc>, window_params = [{transform_indices = @transform_0, window_bounds = array<i64: 8, 128>}, {transform_indices = @transform_1, window_bounds = array<i64: 128, 128>}, {transform_indices = @transform_2, window_bounds = array<i64: 8, 1>}, {transform_indices = @transform_3, window_bounds = array<i64: 1, 128>}, {transform_indices = @transform_4, window_bounds = array<i64: 8, 128>}]} {
    %c0 = arith.constant 0 : index
    %c0_0 = arith.constant 0 : index
    %0 = vector.load %arg2[%c0, %c0_0] : memref<8x128xbf16, #tpu.memory_space<vmem>>, vector<8x128xbf16>
    %c0_1 = arith.constant 0 : index
    %c0_2 = arith.constant 0 : index
    %1 = vector.load %arg3[%c0_1, %c0_2] : memref<128x128xbf16, #tpu.memory_space<vmem>>, vector<128x128xbf16>
    %cst = arith.constant dense<0.000000e+00> : vector<8x128xf32>
    %2 = tpu.matmul %0, %1, %cst {dimension_numbers = #tpu.dot_dimension_numbers<[1], [1], [0], [0], [0, 0, 1, 0], [], []>} : vector<8x128xbf16>, vector<128x128xbf16>, vector<8x128xf32> -> vector<8x128xf32>
    %c0_3 = arith.constant 0 : index
    %c0_4 = arith.constant 0 : index
    %3 = vector.load %arg4[%c0_3, %c0_4] : memref<8x1xf32, #tpu.memory_space<vmem>>, vector<8x1xf32>
    %4 = vector.broadcast %3 : vector<8x1xf32> to vector<8x128xf32>
    %5 = arith.mulf %2, %4 : vector<8x128xf32>
    %c0_5 = arith.constant 0 : index
    %c0_6 = arith.constant 0 : index
    %6 = vector.load %arg5[%c0_5, %c0_6] : memref<1x128xf32, #tpu.memory_space<vmem>>, vector<1x128xf32>
    %7 = vector.broadcast %6 : vector<1x128xf32> to vector<8x128xf32>
    %8 = arith.mulf %5, %7 : vector<8x128xf32>
    %c0_7 = arith.constant 0 : index
    %c0_8 = arith.constant 0 : index
    %9 = vector.load %arg6[%c0_7, %c0_8] : memref<8x128xf32, #tpu.memory_space<vmem>>, vector<8x128xf32>
    tpu.vector_store %arg6[%c0_7, %c0_8], %8 {strides = array<i32>} : memref<8x128xf32, #tpu.memory_space<vmem>>, vector<8x128xf32>,
    return
  }
  func.func @transform_0(%arg0: i32, %arg1: i32) -> (i32, i32) {
    %c0_i32 = arith.constant 0 : i32
    %c0_i32_0 = arith.constant 0 : i32
    return %arg0, %c0_i32 : i32, i32
  }
  func.func @transform_1(%arg0: i32, %arg1: i32) -> (i32, i32) {
    %c0_i32 = arith.constant 0 : i32
    %c0_i32_0 = arith.constant 0 : i32
    return %arg1, %c0_i32 : i32, i32
  }
  func.func @transform_2(%arg0: i32, %arg1: i32) -> (i32, i32) {
    %c0_i32 = arith.constant 0 : i32
    %c0_i32_0 = arith.constant 0 : i32
    return %arg0, %c0_i32 : i32, i32
  }
  func.func @transform_3(%arg0: i32, %arg1: i32) -> (i32, i32) {
    %c0_i32 = arith.constant 0 : i32
    %c0_i32_0 = arith.constant 0 : i32
    return %c0_i32, %arg1 : i32, i32
  }
  func.func @transform_4(%arg0: i32, %arg1: i32) -> (i32, i32) {
    %c0_i32 = arith.constant 0 : i32
    return %arg0, %arg1 : i32, i32
  }
}

</mosaic_0001>

<llo_original>
// kernel: tpu_custom_call.1
$region0: #{tpu_custom_call.1}
  #allocation0 [shape = 'u32[]', space=smem, size = 0x4, offset = 0x4, fixed_abs, tag = 'smem constant byte address 0x4 - core index']
  #allocation1 [shape = 'u32[144,128]{1,0:T(1,128)}', space=vmem, size = 0x12000, scoped, tag = 'internal scratch']
  %s0 = inlined_call_operand.vmem [shape: bf16[8,128], index: 0, kind: input, shape index: {}]
  %s1 = inlined_call_operand.hbm [shape: bf16[128,128], index: 1, kind: input, shape index: {}]
  %s2 = inlined_call_operand.vmem [shape: f32[8,1], index: 2, kind: input, shape index: {}]
  %s3 = inlined_call_operand.vmem [shape: f32[1,128], index: 3, kind: input, shape index: {}]
  %s4 = inlined_call_operand.hbm [shape: f32[8,128], index: 4, kind: output, shape index: {}]
  %s5 = sld [smem:[#allocation0]]
  $region30: #{tpu_custom_call.1} parent=0
    _
  %s7 = ssub.s32 1, %s5
  %s8 = scalar_select 0, %s7, %s5
  $region1: #{tpu_custom_call.1} parent=0
    #allocation2 [shape = 'u8[32768]{0}', space=vmem, size = 0x8000, scoped, tag = 'input window, operand 1, single buffered']
    #allocation3 [shape = 's32[1]{0}', space=sflag, size = 0x4, scoped, tag = 'scoped memory for tpu_custom_call.1']
    #allocation4 [shape = 's32[1]{0}', space=sflag, size = 0x4, scoped, tag = 'scoped memory for tpu_custom_call.1']
    #allocation5 [shape = 'u8[4096]{0}', space=vmem, size = 0x1000, scoped, tag = 'output window, operand 0, single buffered']
    %9 = vsyncpa [#allocation3], 0
    %10 = vsyncpa [#allocation4], 0
    // Predicated region
    $region2: #{tpu_custom_call.1} parent=1 // pred_check
      _
    $region3: #{tpu_custom_call.1} parent=1 // pred_check_branch
      %12 = sbr.rel (0) target = $region5
    $region4: #{tpu_custom_call.1} parent=1 // pred_region
      _
    $region5: #{tpu_custom_call.1} parent=1 // pred_fallthru
      _
    // Predicated region
    $region6: #{tpu_custom_call.1} parent=1 // pred_check
      _
    $region7: #{tpu_custom_call.1} parent=1 // pred_check_branch
      %14 = sbr.rel (0) target = $region9
    $region8: #{tpu_custom_call.1} parent=1 // pred_region
      %s16 = ssub.s32 1024, 1024
      %17 = vsyncadd [#allocation3], %s16
      %s18 = sshll.u32 [#allocation2], 4
      %s19 = int_to_ptr.vmem [resolvable:$true] %s18
      %24 = dma.hbm_to_vmem [thread:$0]  %s1, 1024, %s19, [#allocation3], 64, 64, 4
    $region9: #{tpu_custom_call.1} parent=1 // pred_fallthru
      _
    // Predicated region
    $region10: #{tpu_custom_call.1} parent=1 // pred_check
      _
    $region11: #{tpu_custom_call.1} parent=1 // pred_check_branch
      %26 = sbr.rel (0) target = $region13
    $region12: #{tpu_custom_call.1} parent=1 // pred_region
      _
    $region13: #{tpu_custom_call.1} parent=1 // pred_fallthru
      _
    // Predicated region
    $region14: #{tpu_custom_call.1} parent=1 // pred_check
      _
    $region15: #{tpu_custom_call.1} parent=1 // pred_check_branch
      %28 = sbr.rel (0) target = $region17
    $region16: #{tpu_custom_call.1} parent=1 // pred_region
      _
    $region17: #{tpu_custom_call.1} parent=1 // pred_fallthru
      _
    // Predicated region
    $region18: #{tpu_custom_call.1} parent=1 // pred_check
      _
    $region19: #{tpu_custom_call.1} parent=1 // pred_check_branch
      %30 = sbr.rel (0) target = $region21
    $region20: #{tpu_custom_call.1} parent=1 // pred_region
      %31 = dma.done [#allocation3], 1024
    $region21: #{tpu_custom_call.1} parent=1 // pred_fallthru
      _
    %v33 = vld [vmem:[%s0] sm:$0xf]
    %v34 = vld [vmem:[#allocation2] sm:$0xf]
    %v35 = vld [vmem:[#allocation2 + $0x4] sm:$0xf]
    %v36 = vld [vmem:[#allocation2 + $0x8] sm:$0xf]
    %v37 = vld [vmem:[#allocation2 + $0xc] sm:$0xf]
    %v38 = vld [vmem:[#allocation2 + $0x10] sm:$0xf]
    %v39 = vld [vmem:[#allocation2 + $0x14] sm:$0xf]
    %v40 = vld [vmem:[#allocation2 + $0x18] sm:$0xf]
    %v41 = vld [vmem:[#allocation2 + $0x1c] sm:$0xf]
    %v42 = vld [vmem:[#allocation2 + $0x20] sm:$0xf]
    %v43 = vld [vmem:[#allocation2 + $0x24] sm:$0xf]
    %v44 = vld [vmem:[#allocation2 + $0x28] sm:$0xf]
    %v45 = vld [vmem:[#allocation2 + $0x2c] sm:$0xf]
    %v46 = vld [vmem:[#allocation2 + $0x30] sm:$0xf]
    %v47 = vld [vmem:[#allocation2 + $0x34] sm:$0xf]
    %v48 = vld [vmem:[#allocation2 + $0x38] sm:$0xf]
    %v49 = vld [vmem:[#allocation2 + $0x3c] sm:$0xf]
    %v66 = vunpack.c.l.b16 %v34
    %v67 = vunpack.c.l.b16 %v35
    %v68 = vunpack.c.l.b16 %v36
    %v69 = vunpack.c.l.b16 %v37
    %v70 = vunpack.c.l.b16 %v38
    %v71 = vunpack.c.l.b16 %v39
    %v72 = vunpack.c.l.b16 %v40
    %v73 = vunpack.c.l.b16 %v41
    %v74 = vunpack.c.l.b16 %v42
    %v75 = vunpack.c.l.b16 %v43
    %v76 = vunpack.c.l.b16 %v44
    %v77 = vunpack.c.l.b16 %v45
    %v78 = vunpack.c.l.b16 %v46
    %v79 = vunpack.c.l.b16 %v47
    %v80 = vunpack.c.l.b16 %v48
    %v81 = vunpack.c.l.b16 %v49
    %v82 = vpack.c.b16 %v67, %v66
    %v83 = vpack.c.b16 %v69, %v68
    %v84 = vpack.c.b16 %v71, %v70
    %v85 = vpack.c.b16 %v73, %v72
    %v86 = vpack.c.b16 %v75, %v74
    %v87 = vpack.c.b16 %v77, %v76
    %v88 = vpack.c.b16 %v79, %v78
    %v89 = vpack.c.b16 %v81, %v80
    %98 = vmatprep.subr.bf16.mxu0 0
    %99 = vmatpush1.bf16.xpose.msra.mxu0 %v82
    %100 = vmatprep.subr.bf16.mxu0 0
    %101 = vmatpush1.bf16.xpose.msra.mxu0 %v83
    %102 = vmatprep.subr.bf16.mxu0 0
    %103 = vmatpush1.bf16.xpose.msra.mxu0 %v84
    %104 = vmatprep.subr.bf16.mxu0 0
    %105 = vmatpush1.bf16.xpose.msra.mxu0 %v85
    %106 = vmatprep.subr.bf16.mxu0 0
    %107 = vmatpush1.bf16.xpose.msra.mxu0 %v86
    %108 = vmatprep.subr.bf16.mxu0 0
    %109 = vmatpush1.bf16.xpose.msra.mxu0 %v87
    %110 = vmatprep.subr.bf16.mxu0 0
    %111 = vmatpush1.bf16.xpose.msra.mxu0 %v88
    %112 = vmatprep.subr.bf16.mxu0 0
    %113 = vmatpush1.bf16.xpose.msra.mxu0 %v89
    %114 = vmatprep.subr.bf16.mxu0 0
    %115 = vmatpush1.bf16.xpose.msra.mxu0 0
    %116 = vmatprep.subr.bf16.mxu0 0
    %117 = vmatpush1.bf16.xpose.msra.mxu0 0
    %118 = vmatprep.subr.bf16.mxu0 0
    %119 = vmatpush1.bf16.xpose.msra.mxu0 0
    %120 = vmatprep.subr.bf16.mxu0 0
    %121 = vmatpush1.bf16.xpose.msra.mxu0 0
    %122 = vmatprep.subr.bf16.mxu0 0
    %123 = vmatpush1.bf16.xpose.msra.mxu0 0
    %124 = vmatprep.subr.bf16.mxu0 0
    %125 = vmatpush1.bf16.xpose.msra.mxu0 0
    %126 = vmatprep.subr.bf16.mxu0 0
    %127 = vmatpush1.bf16.xpose.msra.mxu0 0
    %128 = vmatprep.subr.bf16.mxu0 0
    %129 = vmatpush1.bf16.xpose.msra.mxu0 0
    %130 = vmatprep.mubr.bf16.mxu0 0
    %131 = vmatmul.mubr.bf16.gmra.mrb[0].mxu0 %v33
    %v132 = vpop.f32.mrb[0].mxu0
    %v133 = vadd.f32 0.0, %v132
    %v134 = vpop.f32.mrb[0].mxu0
    %v135 = vpop.f32.mrb[0].mxu0
    %v136 = vpop.f32.mrb[0].mxu0
    %137 = vdwg.mxu0
    %v138 = vld [vmem:[%s2] sm:$0xff]
    %140 = vset.pattern.permute.xlu0 0
    %141 = vperm.xlu0 %140, %v138
    %v142 = vpop.permute.xlu0 %141
    %v144 = vmul.f32 %v133, %v142
    %v145 = vld [vmem:[%s3] sm:$0x1]
    %v147 = vlaneseq
    %v148 = vshrl.u32 %v147, 7
    %v149 = vsub.s32 0, %v148
    %v150 = vrot.slane %v145, %v149
    %v152 = vmul.f32 %v144, %v150
    %153 = vst [vmem:[#allocation5] sm:$0xff] %v152
    // Predicated region
    $region22: #{tpu_custom_call.1} parent=1 // pred_check
      _
    $region23: #{tpu_custom_call.1} parent=1 // pred_check_branch
      %155 = sbr.rel (0) target = $region25
    $region24: #{tpu_custom_call.1} parent=1 // pred_region
      %s157 = ssub.s32 128, 128
      %158 = vsyncadd [#allocation4], %s157
      %s160 = sshll.u32 [#allocation5], 4
      %s161 = int_to_ptr.vmem [resolvable:$true] %s160
      %163 = dma.vmem_to_hbm [thread:$0]  %s161, 128, %s4, [#allocation4]
    $region25: #{tpu_custom_call.1} parent=1 // pred_fallthru
      _
    // Predicated region
    $region26: #{tpu_custom_call.1} parent=1 // pred_check
      _
    $region27: #{tpu_custom_call.1} parent=1 // pred_check_branch
      %165 = sbr.rel (0) target = $region29
    $region28: #{tpu_custom_call.1} parent=1 // pred_region
      %166 = dma.done [#allocation4], 128
    $region29: #{tpu_custom_call.1} parent=1 // pred_fallthru
      _
    %167 = vsyncpa [#allocation3], 1
    %168 = vsyncpa [#allocation4], 1

</llo_original>
